<compile_context>
chip_gen: v7x
topology: tpu7x:2x2x1
jax: 0.10.0
libtpu: 0.0.40
codegen_flags: <defaults>
</compile_context>

<pallas_src>
import functools

import jax
import jax.numpy as jnp
from jax import lax
from jax.experimental import pallas as pl
from jax.experimental.pallas import tpu as pltpu


_MAX_BLOCK_TOKENS = 256           # upper bound on tokens gathered per grid step
_BLOCK_BYTES_BUDGET = 6 * 1024 * 1024   # budget for (2x f32 out block + gather scratch)
_ONEHOT_MAX_VOCAB = 2048          # one-hot MXU gather only below this (padded) vocab size
_N_INFLIGHT_DMAS = 16             # outstanding row DMAs in the HBM-gather path


def _round_up(x: int, m: int) -> int:
    return (x + m - 1) // m * m


def _vmem_capacity_bytes() -> int:
    """Per-core VMEM capacity; conservative 64 MiB (v7x per-TC) if the query fails."""
    try:
        info = pltpu.get_tpu_info()
        cap = getattr(info, "vmem_capacity_bytes", None)
        if cap:
            return int(cap)
    except Exception:
        pass
    return 64 * 1024 * 1024


# ---------------------------------------------------------------------------
# Path A: whole (padded) table resident in VMEM, MXU one-hot gather.
# ---------------------------------------------------------------------------
def _onehot_gather_kernel(ids_ref, table_ref, out_ref):
    ids = ids_ref[...]                                   # (block_tokens, 1) int32 in VMEM
    padded_vocab = table_ref.shape[0]
    iota = lax.broadcasted_iota(jnp.int32, (ids.shape[0], padded_vocab), 1)
    one_hot = (iota == ids).astype(table_ref.dtype)      # lane-broadcast compare, no SMEM reads
    out_ref[...] = jnp.dot(
        one_hot, table_ref[...], preferred_element_type=jnp.float32
    ).astype(out_ref.dtype)                              # one dense (block, D) store


# ---------------------------------------------------------------------------
# Path B: table resident in VMEM, per-token dynamic row copy (medium vocab).
# ---------------------------------------------------------------------------
def _rowcopy_gather_kernel(ids_ref, table_ref, out_ref, *, block_tokens: int):
    base = pl.program_id(0) * block_tokens

    def body(t, carry):
        tok = ids_ref[base + t]                          # SMEM scalar read
        out_ref[pl.ds(t, 1), :] = table_ref[pl.ds(tok, 1), :].astype(out_ref.dtype)
        return carry

    lax.fori_loop(0, block_tokens, body, 0, unroll=8)


# ---------------------------------------------------------------------------
# Path C: weight stays in HBM; ring of outstanding single-row DMAs.
# ---------------------------------------------------------------------------
def _dma_gather_kernel(ids_ref, w_hbm_ref, out_ref, *scratch,
                       block_tokens: int, n_inflight: int):
    if len(scratch) == 2:
        rows_vmem, sems = scratch                        # non-f32 weights: stage + cast
        dst = rows_vmem
    else:
        (sems,) = scratch                                # f32 weights: DMA straight to output
        rows_vmem = None
        dst = out_ref

    base = pl.program_id(0) * block_tokens

    def issue(t, tok):
        pltpu.make_async_copy(
            w_hbm_ref.at[pl.ds(tok, 1), :],
            dst.at[pl.ds(t, 1), :],
            sems.at[t % n_inflight],
        ).start()

    def wait(t):
        # NOTE: every row transfer has identical geometry/byte count (1 row x D in the
        # weight dtype), so a dummy src slice with the same shape is a valid wait handle.
        pltpu.make_async_copy(
            w_hbm_ref.at[pl.ds(0, 1), :],
            dst.at[pl.ds(t, 1), :],
            sems.at[t % n_inflight],
        ).wait()

    n_prime = min(n_inflight, block_tokens)
    for t in range(n_prime):                             # static unroll: prime the ring
        issue(t, ids_ref[base + t])

    def body(t, carry):
        tok = ids_ref[base + t]                          # read id BEFORE wait (SMEM forwarding)
        wait(t - n_inflight)                             # slot becomes free
        issue(t, tok)                                    # keep n_inflight copies in flight
        return carry

    lax.fori_loop(n_prime, block_tokens, body, 0, unroll=4)

    for s in range(n_prime):                             # drain the last outstanding copies
        wait(block_tokens - n_prime + s)

    if rows_vmem is not None:                            # bf16/int8 weights: wide upcast store
        out_ref[...] = rows_vmem[...].astype(out_ref.dtype)


# ---------------------------------------------------------------------------
# Wrapper: Embedding.forward equivalent.
# ---------------------------------------------------------------------------
def embedding_lookup(token_ids: jax.Array, weight: jax.Array, *,
                     max_table_vmem_bytes: int | None = None) -> jax.Array:
    """output[b, s] = weight[token_ids[b, s]]; output dtype float32 (matches the reference)."""
    batch_size, seq_len = token_ids.shape
    vocab_size, embed_dim = weight.shape
    n_tokens = batch_size * seq_len
    out_dtype = jnp.float32                              # torch.empty default dtype in reference
    itemsize = jnp.dtype(weight.dtype).itemsize

    # --- generation-aware VMEM budgeting -----------------------------------
    vmem_cap = _vmem_capacity_bytes()                    # 128 MiB v5e/v6e, 64 MiB/TC v7x
    vmem_limit = max(32 * 1024 * 1024, vmem_cap * 3 // 4)

    # token block sized so 2x f32 out block + 1x gather scratch stays within budget
    bt_cap = max(8, (_BLOCK_BYTES_BUDGET // (3 * embed_dim * 4)) // 8 * 8)
    block_tokens = min(_MAX_BLOCK_TOKENS, bt_cap, _round_up(n_tokens, 8))
    n_padded = _round_up(n_tokens, block_tokens)
    n_blocks = n_padded // block_tokens

    pipeline_bytes = 3 * block_tokens * embed_dim * 4 + 64 * 1024
    if max_table_vmem_bytes is None:
        max_table_vmem_bytes = max(0, vmem_limit - pipeline_bytes - (2 << 20))

    ids = token_ids.reshape(n_tokens).astype(jnp.int32)
    ids = jnp.clip(ids, 0, vocab_size - 1)               # PyTorch would raise on OOB ids
    ids = jnp.pad(ids, (0, n_padded - n_tokens))         # padded rows are sliced off below

    table_bytes = vocab_size * embed_dim * itemsize
    use_vmem_table = table_bytes <= max_table_vmem_bytes

    padded_vocab = _round_up(vocab_size, 128)
    onehot_extra = block_tokens * padded_vocab * (4 + itemsize)   # iota + one-hot intermediates
    use_onehot = (
        use_vmem_table
        and padded_vocab <= _ONEHOT_MAX_VOCAB
        and padded_vocab * embed_dim * itemsize + onehot_extra <= max_table_vmem_bytes
    )

    cost = pl.CostEstimate(
        flops=int(2 * n_padded * padded_vocab * embed_dim) if use_onehot else 0,
        transcendentals=0,
        bytes_accessed=int(n_padded * 4
                           + n_padded * embed_dim * itemsize
                           + n_padded * embed_dim * 4),
    )
    compiler_params = pltpu.CompilerParams(
        dimension_semantics=("parallel",),               # shard token blocks across TCs on v7x
        vmem_limit_bytes=int(vmem_limit),
    )
    out_shape = jax.ShapeDtypeStruct((n_padded, embed_dim), out_dtype)

    if use_onehot:
        table = weight
        if padded_vocab != vocab_size:                   # pad vocab to a lane multiple (cheap, small V)
            table = jnp.pad(weight, ((0, padded_vocab - vocab_size), (0, 0)))
        ids_2d = ids.reshape(n_padded, 1)
        kernel = _onehot_gather_kernel
        grid_spec = pltpu.PrefetchScalarGridSpec(
            num_scalar_prefetch=0,
            grid=(n_blocks,),
            in_specs=[
                pl.BlockSpec((block_tokens, 1), lambda i: (i, 0)),
                # Constant index_map keeps the whole table resident in VMEM across steps.
                pl.BlockSpec((padded_vocab, embed_dim), lambda i: (0, 0)),
            ],
            out_specs=pl.BlockSpec((block_tokens, embed_dim), lambda i: (i, 0)),
        )
        args = (ids_2d, table)
    elif use_vmem_table:
        kernel = functools.partial(_rowcopy_gather_kernel, block_tokens=block_tokens)
        grid_spec = pltpu.PrefetchScalarGridSpec(
            num_scalar_prefetch=1,                       # token ids land in SMEM
            grid=(n_blocks,),
            in_specs=[pl.BlockSpec((vocab_size, embed_dim), lambda i, ids_ref: (0, 0))],
            out_specs=pl.BlockSpec((block_tokens, embed_dim), lambda i, ids_ref: (i, 0)),
        )
        args = (ids, weight)
    else:
        direct_to_out = jnp.dtype(weight.dtype) == jnp.dtype(out_dtype)
        n_inflight = min(_N_INFLIGHT_DMAS, block_tokens)
        kernel = functools.partial(_dma_gather_kernel,
                                   block_tokens=block_tokens, n_inflight=n_inflight)
        scratch = [] if direct_to_out else [pltpu.VMEM((block_tokens, embed_dim), weight.dtype)]
        scratch.append(pltpu.SemaphoreType.DMA((n_inflight,)))
        grid_spec = pltpu.PrefetchScalarGridSpec(
            num_scalar_prefetch=1,
            grid=(n_blocks,),
            in_specs=[pl.BlockSpec(memory_space=pl.ANY)],         # weight stays in HBM
            out_specs=pl.BlockSpec((block_tokens, embed_dim), lambda i, ids_ref: (i, 0)),
            scratch_shapes=scratch,
        )
        args = (ids, weight)

    out_flat = pl.pallas_call(
        kernel,
        out_shape=out_shape,
        grid_spec=grid_spec,
        compiler_params=compiler_params,
        cost_estimate=cost,
    )(*args)

    return out_flat[:n_tokens].reshape(batch_size, seq_len, embed_dim)


def init_embedding_weight(key: jax.Array, num_embeddings: int, embedding_dim: int,
                          dtype=jnp.float32) -> jax.Array:
    # nn.init.trunc_normal_(weight, mean=0, std=1, a=-3, b=3)
    return jax.random.truncated_normal(
        key, lower=-3.0, upper=3.0, shape=(num_embeddings, embedding_dim)
    ).astype(dtype)


if __name__ == "__main__":
    key = jax.random.PRNGKey(0)
    k_w1, k_id1, k_w2, k_id2, k_w3, k_id3 = jax.random.split(key, 6)

    # --- Path A: small vocab, one-hot MXU gather (table resident in VMEM) ---
    V1, D1, B1, S1 = 64, 128, 2, 8
    w1 = init_embedding_weight(k_w1, V1, D1)
    ids1 = jax.random.randint(k_id1, (B1, S1), 0, V1, dtype=jnp.int32)
    out1 = jax.block_until_ready(embedding_lookup(ids1, w1))
    ref1 = jnp.take(w1, ids1, axis=0).astype(jnp.float32)
    assert out1.shape == (B1, S1, D1) and out1.dtype == jnp.float32
    assert jnp.allclose(out1, ref1), "one-hot MXU path mismatch vs reference"

    # --- Path C: HBM DMA-ring gather (forced via budget=0), f32 direct-to-out ---
    V2, D2, B2, S2 = 512, 256, 2, 40
    w2 = init_embedding_weight(k_w2, V2, D2)
    ids2 = jax.random.randint(k_id2, (B2, S2), 0, V2, dtype=jnp.int32)
    out2 = jax.block_until_ready(embedding_lookup(ids2, w2, max_table_vmem_bytes=0))
    ref2 = jnp.take(w2, ids2, axis=0).astype(jnp.float32)
    assert out2.shape == (B2, S2, D2) and out2.dtype == jnp.float32
    assert jnp.allclose(out2, ref2), "DMA-gather path mismatch vs reference"

    # --- Path B: medium vocab, VMEM-resident row-copy gather -----------------
    V3, D3, B3, S3 = 4096, 64, 2, 16
    w3 = init_embedding_weight(k_w3, V3, D3)
    ids3 = jax.random.randint(k_id3, (B3, S3), 0, V3, dtype=jnp.int32)
    out3 = jax.block_until_ready(embedding_lookup(ids3, w3))
    ref3 = jnp.take(w3, ids3, axis=0).astype(jnp.float32)
    assert out3.shape == (B3, S3, D3) and out3.dtype == jnp.float32
    assert jnp.allclose(out3, ref3), "row-copy resident-table path mismatch vs reference"

    print("KERNEL_OK")
</pallas_src>

<mosaic_0001>
module attributes {stable_mosaic.version = 11 : i64} {
  func.func @_onehot_gather_kernel(%arg0: i32, %arg1: memref<16x1xi32, #tpu.memory_space<vmem>>, %arg2: memref<128x128xf32, #tpu.memory_space<vmem>>, %arg3: memref<16x128xf32, #tpu.memory_space<vmem>>) attributes {dimension_semantics = [#tpu.dimension_semantics<parallel>], iteration_bounds = array<i64: 1>, scalar_prefetch = 0 : i64, scratch_operands = 0 : i64, tpu.core_type = #tpu.core_type<tc>, window_params = [{transform_indices = @transform_0, window_bounds = array<i64: 16, 1>}, {pipeline_mode = #tpu.pipeline_mode<synchronous>, transform_indices = @transform_1, window_bounds = array<i64: 128, 128>}, {transform_indices = @transform_2, window_bounds = array<i64: 16, 128>}]} {
    %c0 = arith.constant 0 : index
    %c0_0 = arith.constant 0 : index
    %0 = vector.load %arg1[%c0, %c0_0] : memref<16x1xi32, #tpu.memory_space<vmem>>, vector<16x1xi32>
    %1 = tpu.iota {dimensions = array<i32: 1>} : vector<16x128xi32>
    %2 = vector.broadcast %0 : vector<16x1xi32> to vector<16x128xi32>
    %3 = arith.cmpi eq, %1, %2 : vector<16x128xi32>
    %4 = arith.extui %3 : vector<16x128xi1> to vector<16x128xi32>
    %5 = arith.sitofp %4 : vector<16x128xi32> to vector<16x128xf32>
    %c0_1 = arith.constant 0 : index
    %c0_2 = arith.constant 0 : index
    %6 = vector.load %arg2[%c0_1, %c0_2] : memref<128x128xf32, #tpu.memory_space<vmem>>, vector<128x128xf32>
    %cst = arith.constant dense<0.000000e+00> : vector<16x128xf32>
    %7 = tpu.matmul %5, %6, %cst {dimension_numbers = #tpu.dot_dimension_numbers<[1], [0], [0], [1], [0, 0, 1, 1], [], []>} : vector<16x128xf32>, vector<128x128xf32>, vector<16x128xf32> -> vector<16x128xf32>
    %c0_3 = arith.constant 0 : index
    %c0_4 = arith.constant 0 : index
    %8 = vector.load %arg3[%c0_3, %c0_4] : memref<16x128xf32, #tpu.memory_space<vmem>>, vector<16x128xf32>
    tpu.vector_store %arg3[%c0_3, %c0_4], %7 {strides = array<i32>} : memref<16x128xf32, #tpu.memory_space<vmem>>, vector<16x128xf32>,
    return
  }
  func.func @transform_0(%arg0: i32) -> (i32, i32) {
    %c0_i32 = arith.constant 0 : i32
    %c0_i32_0 = arith.constant 0 : i32
    return %arg0, %c0_i32 : i32, i32
  }
  func.func @transform_1(%arg0: i32) -> (i32, i32) {
    %c0_i32 = arith.constant 0 : i32
    %c0_i32_0 = arith.constant 0 : i32
    %c0_i32_1 = arith.constant 0 : i32
    return %c0_i32, %c0_i32_0 : i32, i32
  }
  func.func @transform_2(%arg0: i32) -> (i32, i32) {
    %c0_i32 = arith.constant 0 : i32
    %c0_i32_0 = arith.constant 0 : i32
    return %arg0, %c0_i32 : i32, i32
  }
}

</mosaic_0001>

<llo_original>
// kernel: tpu_custom_call.1
$region0: #{tpu_custom_call.1}
  #allocation0 [shape = 'u32[]', space=smem, size = 0x4, offset = 0x4, fixed_abs, tag = 'smem constant byte address 0x4 - core index']
  #allocation1 [shape = 'u32[144,128]{1,0:T(1,128)}', space=vmem, size = 0x12000, scoped, tag = 'internal scratch']
  %s0 = inlined_call_operand.vmem [shape: s32[16,1], index: 0, kind: input, shape index: {}]
  %s1 = inlined_call_operand.hbm [shape: f32[128,128], index: 1, kind: input, shape index: {}]
  %s2 = inlined_call_operand.hbm [shape: f32[16,128], index: 2, kind: output, shape index: {}]
  %s3 = sld [smem:[#allocation0]]
  $region22: #{tpu_custom_call.1} parent=0
    _
  %s5 = ssub.s32 1, %s3
  %s6 = scalar_select 0, %s5, %s3
  $region1: #{tpu_custom_call.1} parent=0
    #allocation2 [shape = 'u8[65536]{0}', space=vmem, size = 0x10000, scoped, tag = 'input window, operand 1, single buffered']
    #allocation3 [shape = 's32[1]{0}', space=sflag, size = 0x4, scoped, tag = 'scoped memory for tpu_custom_call.1']
    #allocation4 [shape = 's32[1]{0}', space=sflag, size = 0x4, scoped, tag = 'scoped memory for tpu_custom_call.1']
    #allocation5 [shape = 'u8[8192]{0}', space=vmem, size = 0x2000, scoped, tag = 'output window, operand 0, single buffered']
    %7 = vsyncpa [#allocation3], 0
    %8 = vsyncpa [#allocation4], 0
    // Predicated region
    $region2: #{tpu_custom_call.1} parent=1 // pred_check
      _
    $region3: #{tpu_custom_call.1} parent=1 // pred_check_branch
      %10 = sbr.rel (0) target = $region5
    $region4: #{tpu_custom_call.1} parent=1 // pred_region
      _
    $region5: #{tpu_custom_call.1} parent=1 // pred_fallthru
      _
    // Predicated region
    $region6: #{tpu_custom_call.1} parent=1 // pred_check
      _
    $region7: #{tpu_custom_call.1} parent=1 // pred_check_branch
      %12 = sbr.rel (0) target = $region9
    $region8: #{tpu_custom_call.1} parent=1 // pred_region
      %s14 = ssub.s32 2048, 2048
      %15 = vsyncadd [#allocation3], %s14
      %s16 = sshll.u32 [#allocation2], 4
      %s17 = int_to_ptr.vmem [resolvable:$true] %s16
      %22 = dma.hbm_to_vmem [thread:$0]  %s1, 2048, %s17, [#allocation3], 128, 128, 8
    $region9: #{tpu_custom_call.1} parent=1 // pred_fallthru
      _
    // Predicated region
    $region10: #{tpu_custom_call.1} parent=1 // pred_check
      _
    $region11: #{tpu_custom_call.1} parent=1 // pred_check_branch
      %24 = sbr.rel (0) target = $region13
    $region12: #{tpu_custom_call.1} parent=1 // pred_region
      %25 = dma.done [#allocation3], 2048
    $region13: #{tpu_custom_call.1} parent=1 // pred_fallthru
      _
    %v26 = vld [vmem:[%s0] sm:$0xff]
    %v27 = vld [vmem:[%s0 + $0x8] sm:$0xff]
    %v28 = vlaneseq
    %v29 = vand.u32 %v28, 127
    %30 = vset.pattern.permute.xlu0 0
    %31 = vperm.xlu0 %30, %v26
    %v32 = vpop.permute.xlu0 %31
    %33 = vset.pattern.permute.xlu0 0
    %34 = vperm.xlu0 %33, %v27
    %v35 = vpop.permute.xlu0 %34
    %vm36 = vcmp.eq.s32.totalorder %v29, %v32
    %vm37 = vcmp.eq.s32.totalorder %v29, %v35
    %v38 = vsel %vm36, 1, 0
    %v39 = vsel %vm37, 1, 0
    %v40 = vcvt.s32.f32 %v38
    %v41 = vcvt.s32.f32 %v39
    %v42 = vld [vmem:[#allocation2] sm:$0xff]
    %v43 = vld [vmem:[#allocation2 + $0x8] sm:$0xff]
    %v44 = vld [vmem:[#allocation2 + $0x10] sm:$0xff]
    %v45 = vld [vmem:[#allocation2 + $0x18] sm:$0xff]
    %v46 = vld [vmem:[#allocation2 + $0x20] sm:$0xff]
    %v47 = vld [vmem:[#allocation2 + $0x28] sm:$0xff]
    %v48 = vld [vmem:[#allocation2 + $0x30] sm:$0xff]
    %v49 = vld [vmem:[#allocation2 + $0x38] sm:$0xff]
    %v50 = vld [vmem:[#allocation2 + $0x40] sm:$0xff]
    %v51 = vld [vmem:[#allocation2 + $0x48] sm:$0xff]
    %v52 = vld [vmem:[#allocation2 + $0x50] sm:$0xff]
    %v53 = vld [vmem:[#allocation2 + $0x58] sm:$0xff]
    %v54 = vld [vmem:[#allocation2 + $0x60] sm:$0xff]
    %v55 = vld [vmem:[#allocation2 + $0x68] sm:$0xff]
    %v56 = vld [vmem:[#allocation2 + $0x70] sm:$0xff]
    %v57 = vld [vmem:[#allocation2 + $0x78] sm:$0xff]
    %58 = vmatprep.subr.mxu0 0.0
    %59 = vmatpush1.msra.mxu0 %v42
    %60 = vmatprep.subr.mxu0 0.0
    %61 = vmatpush1.msra.mxu0 %v43
    %62 = vmatprep.subr.mxu0 0.0
    %63 = vmatpush1.msra.mxu0 %v44
    %64 = vmatprep.subr.mxu0 0.0
    %65 = vmatpush1.msra.mxu0 %v45
    %66 = vmatprep.subr.mxu0 0.0
    %67 = vmatpush1.msra.mxu0 %v46
    %68 = vmatprep.subr.mxu0 0.0
    %69 = vmatpush1.msra.mxu0 %v47
    %70 = vmatprep.subr.mxu0 0.0
    %71 = vmatpush1.msra.mxu0 %v48
    %72 = vmatprep.subr.mxu0 0.0
    %73 = vmatpush1.msra.mxu0 %v49
    %74 = vmatprep.subr.mxu0 0.0
    %75 = vmatpush1.msra.mxu0 %v50
    %76 = vmatprep.subr.mxu0 0.0
    %77 = vmatpush1.msra.mxu0 %v51
    %78 = vmatprep.subr.mxu0 0.0
    %79 = vmatpush1.msra.mxu0 %v52
    %80 = vmatprep.subr.mxu0 0.0
    %81 = vmatpush1.msra.mxu0 %v53
    %82 = vmatprep.subr.mxu0 0.0
    %83 = vmatpush1.msra.mxu0 %v54
    %84 = vmatprep.subr.mxu0 0.0
    %85 = vmatpush1.msra.mxu0 %v55
    %86 = vmatprep.subr.mxu0 0.0
    %87 = vmatpush1.msra.mxu0 %v56
    %88 = vmatprep.subr.mxu0 0.0
    %89 = vmatpush1.msra.mxu0 %v57
    %90 = vmatprep.subr.mxu0 0.0
    %91 = vmatpush1.msra.mxu0 0.0
    %92 = vmatprep.subr.mxu0 0.0
    %93 = vmatpush1.msra.mxu0 0.0
    %94 = vmatprep.subr.mxu0 0.0
    %95 = vmatpush1.msra.mxu0 0.0
    %96 = vmatprep.subr.mxu0 0.0
    %97 = vmatpush1.msra.mxu0 0.0
    %98 = vmatprep.subr.mxu0 0.0
    %99 = vmatpush1.msra.mxu0 0.0
    %100 = vmatprep.subr.mxu0 0.0
    %101 = vmatpush1.msra.mxu0 0.0
    %102 = vmatprep.subr.mxu0 0.0
    %103 = vmatpush1.msra.mxu0 0.0
    %104 = vmatprep.subr.mxu0 0.0
    %105 = vmatpush1.msra.mxu0 0.0
    %106 = vmatprep.subr.mxu0 0.0
    %107 = vmatpush1.msra.mxu0 0.0
    %108 = vmatprep.subr.mxu0 0.0
    %109 = vmatpush1.msra.mxu0 0.0
    %110 = vmatprep.subr.mxu0 0.0
    %111 = vmatpush1.msra.mxu0 0.0
    %112 = vmatprep.subr.mxu0 0.0
    %113 = vmatpush1.msra.mxu0 0.0
    %114 = vmatprep.subr.mxu0 0.0
    %115 = vmatpush1.msra.mxu0 0.0
    %116 = vmatprep.subr.mxu0 0.0
    %117 = vmatpush1.msra.mxu0 0.0
    %118 = vmatprep.subr.mxu0 0.0
    %119 = vmatpush1.msra.mxu0 0.0
    %120 = vmatprep.subr.mxu0 0.0
    %121 = vmatpush1.msra.mxu0 0.0
    %122 = vmatprep.mubr.f32.mxu0 0.0
    %123 = vmatmul.mubr.f32.gmra.mrb[0].mxu0 %v40
    %v124 = vpop.f32.mrb[0].mxu0
    %v125 = vadd.f32 0.0, %v124
    %v126 = vpop.f32.mrb[0].mxu0
    %127 = vmatprep.mubr.f32.mxu0 0.0
    %128 = vmatmul.mubr.f32.gmra.mrb[0].mxu0 %v41
    %v129 = vpop.f32.mrb[0].mxu0
    %v130 = vadd.f32 0.0, %v129
    %v131 = vpop.f32.mrb[0].mxu0
    %132 = vdwg.mxu0
    %133 = vst [vmem:[#allocation5] sm:$0xff] %v125
    %134 = vst [vmem:[#allocation5 + $0x8] sm:$0xff] %v130
    // Predicated region
    $region14: #{tpu_custom_call.1} parent=1 // pred_check
      _
    $region15: #{tpu_custom_call.1} parent=1 // pred_check_branch
      %136 = sbr.rel (0) target = $region17
    $region16: #{tpu_custom_call.1} parent=1 // pred_region
      %s138 = ssub.s32 256, 256
      %139 = vsyncadd [#allocation4], %s138
      %s140 = sshll.u32 [#allocation5], 4
      %s141 = int_to_ptr.vmem [resolvable:$true] %s140
      %146 = dma.vmem_to_hbm [thread:$0]  %s141, 256, %s2, [#allocation4], 128, 128, 8
    $region17: #{tpu_custom_call.1} parent=1 // pred_fallthru
      _
    // Predicated region
    $region18: #{tpu_custom_call.1} parent=1 // pred_check
      _
    $region19: #{tpu_custom_call.1} parent=1 // pred_check_branch
      %148 = sbr.rel (0) target = $region21
    $region20: #{tpu_custom_call.1} parent=1 // pred_region
      %149 = dma.done [#allocation4], 256
    $region21: #{tpu_custom_call.1} parent=1 // pred_fallthru
      _
    %150 = vsyncpa [#allocation3], 1
    %151 = vsyncpa [#allocation4], 1

</llo_original>
